<compile_context>
chip_gen: v5e
topology: v5e:2x2
jax: 0.10.0
libtpu: 0.0.40
codegen_flags: <defaults>
</compile_context>

<pallas_src>
import functools

import jax
import jax.numpy as jnp
from jax.experimental import pallas as pl
from jax.experimental.pallas import tpu as pltpu

ALPHA = 0.25
GAMMA = 2.0
IGNORE_INDEX = 6
TP_MAX = 32768  # pixels (lanes) per grid step; multiple of 128, sweep 16K..64K


def _round_up(x, m):
    return ((x + m - 1) // m) * m


def _focal_ce_partial_kernel(logits_ref, labels_ref, sum_out_ref, cnt_out_ref,
                             sum_acc, cnt_acc, *, ignore_index):
    p = pl.program_id(2)

    # init per-lane accumulators at the start of each (image, split)'s reduction
    @pl.when(p == 0)
    def _():
        sum_acc[...] = jnp.zeros_like(sum_acc)
        cnt_acc[...] = jnp.zeros_like(cnt_acc)

    x = logits_ref[...].astype(jnp.float32)      # (C, TP)  classes on sublanes
    labels = labels_ref[...].astype(jnp.int32)   # (1, TP)  int8 -> int32 upcast
    c, tp = x.shape

    # numerically stable log-sum-exp over the class (sublane) axis
    col_max = jnp.max(x, axis=0, keepdims=True)                               # (1, TP)
    lse = col_max + jnp.log(jnp.sum(jnp.exp(x - col_max), axis=0, keepdims=True))

    # fused one-hot gather of the logit at the target class (C is tiny)
    class_ids = jax.lax.broadcasted_iota(jnp.int32, (c, tp), 0)
    x_at_label = jnp.sum(jnp.where(class_ids == labels, x, 0.0),
                         axis=0, keepdims=True)                               # (1, TP)

    ce = lse - x_at_label                                                     # (1, TP)
    # padded lanes carry label == ignore_index, so no separate ragged-tile mask needed
    valid = labels != ignore_index                                            # (1, TP)

    # per-lane accumulation (pure VPU adds)
    sum_acc[...] += jnp.where(valid, ce, 0.0)
    cnt_acc[...] += valid.astype(jnp.float32)

    # finalize: one cross-lane reduce per (image, split), written to a tiny block
    @pl.when(p == pl.num_programs(2) - 1)
    def _():
        total = jnp.sum(sum_acc[...])
        count = jnp.sum(cnt_acc[...])
        sum_out_ref[...] = jnp.full(sum_out_ref.shape, total, jnp.float32)
        cnt_out_ref[...] = jnp.full(cnt_out_ref.shape, count, jnp.float32)


def focal_loss_pallas(logits, labels, *, alpha=ALPHA, gamma=GAMMA,
                      ignore_index=IGNORE_INDEX, tp_max=TP_MAX):
    n, c, h, w = logits.shape
    hw = h * w

    # When the batch axis alone cannot keep both v7x TensorCores busy (odd / unit N),
    # split the pixel range across an extra "parallel" grid axis.
    n_split = 2 if (n % 2 == 1 and hw >= 2 * 128) else 1

    # Pixel tile: multiple of 128 lanes, as large as possible to amortize step overhead.
    tp = min(tp_max, _round_up(-(-hw // n_split), 128))
    tiles_per_split = -(-hw // (n_split * tp))
    hw_final = n_split * tiles_per_split * tp

    # Free reshapes: classes -> sublanes, pixels -> lanes (no NCHW -> NHWC transpose).
    # Logits keep their input dtype (bf16 stays bf16 in HBM; f32 upcast is in-kernel).
    x = logits.reshape(n, c, hw)
    lab_dtype = jnp.int8 if (c <= 127 and 0 <= ignore_index <= 127) else jnp.int32
    y = labels.reshape(n, 1, hw).astype(lab_dtype)

    # Pad the pixel axis to a whole number of tiles so the kernel needs no ragged-tile
    # mask.  Padded labels = ignore_index (contribute 0 to sum and count); padded
    # logits = 0 (all math stays finite).  No-op for typical (power-of-two) image sizes.
    if hw_final != hw:
        x = jnp.pad(x, ((0, 0), (0, 0), (0, hw_final - hw)))
        y = jnp.pad(y, ((0, 0), (0, 0), (0, hw_final - hw)),
                    constant_values=ignore_index)

    kernel = functools.partial(_focal_ce_partial_kernel, ignore_index=ignore_index)

    sums, cnts = pl.pallas_call(
        kernel,
        out_shape=(
            jax.ShapeDtypeStruct((n, n_split, 8, 128), jnp.float32),  # CE sums
            jax.ShapeDtypeStruct((n, n_split, 8, 128), jnp.float32),  # valid counts
        ),
        grid_spec=pltpu.PrefetchScalarGridSpec(
            num_scalar_prefetch=0,
            grid=(n, n_split, tiles_per_split),
            in_specs=[
                pl.BlockSpec((None, c, tp),
                             lambda i, s, p: (i, 0, s * tiles_per_split + p)),
                pl.BlockSpec((None, 1, tp),
                             lambda i, s, p: (i, 0, s * tiles_per_split + p)),
            ],
            out_specs=(
                pl.BlockSpec((None, 1, 8, 128), lambda i, s, p: (i, s, 0, 0)),
                pl.BlockSpec((None, 1, 8, 128), lambda i, s, p: (i, s, 0, 0)),
            ),
            scratch_shapes=[
                pltpu.VMEM((1, tp), jnp.float32),   # per-lane CE partial sums
                pltpu.VMEM((1, tp), jnp.float32),   # per-lane valid-pixel counts
            ],
        ),
        compiler_params=pltpu.CompilerParams(
            dimension_semantics=("parallel", "parallel", "arbitrary"),
            vmem_limit_bytes=48 * 1024 * 1024,   # safely above v5e's 16 MiB default
        ),
    )(x, y)

    # Tiny scalar epilogue: mean CE over valid pixels, then the focal transform.
    total_ce = jnp.sum(sums[:, :, 0, 0])
    count = jnp.sum(cnts[:, :, 0, 0])
    mean_ce = total_ce / count        # NaN if every pixel is ignored (matches PyTorch)
    log_pt = -mean_ce
    return -(alpha * (1.0 - jnp.exp(log_pt)) ** gamma * log_pt)


def focal_loss_ref(logits, labels, *, alpha=ALPHA, gamma=GAMMA,
                   ignore_index=IGNORE_INDEX):
    n, c, h, w = logits.shape
    x = jnp.transpose(logits, (0, 2, 3, 1)).reshape(-1, c).astype(jnp.float32)
    y = labels.reshape(-1)
    lse = jax.scipy.special.logsumexp(x, axis=-1)
    x_at = jnp.take_along_axis(x, jnp.clip(y, 0, c - 1)[:, None], axis=-1)[:, 0]
    ce = lse - x_at
    valid = (y != ignore_index)
    mean_ce = jnp.sum(jnp.where(valid, ce, 0.0)) / jnp.sum(valid).astype(jnp.float32)
    log_pt = -mean_ce
    return -(alpha * (1.0 - jnp.exp(log_pt)) ** gamma * log_pt)


if __name__ == "__main__":
    key = jax.random.PRNGKey(0)
    k_logits, k_labels = jax.random.split(key)

    N, C, H, W = 2, 7, 16, 16   # ignore_index=6 implies 7 classes; class 6 is ignored
    logits = jax.random.normal(k_logits, (N, C, H, W), dtype=jnp.float32)
    labels = jax.random.randint(k_labels, (N, H, W), 0, C, dtype=jnp.int32)

    out = focal_loss_pallas(logits, labels)
    out = jax.block_until_ready(out)

    ref = focal_loss_ref(logits, labels)
    assert jnp.allclose(out, ref, rtol=1e-5, atol=1e-5), (out, ref)

    print("KERNEL_OK")
</pallas_src>

<mosaic_0001>
module attributes {stable_mosaic.version = 11 : i64} {
  func.func @_focal_ce_partial_kernel(%arg0: i32, %arg1: i32, %arg2: i32, %arg3: memref<1x7x256xf32, #tpu.memory_space<vmem>>, %arg4: memref<1x1x256xi8, #tpu.memory_space<vmem>>, %arg5: memref<1x1x8x128xf32, #tpu.memory_space<vmem>>, %arg6: memref<1x1x8x128xf32, #tpu.memory_space<vmem>>, %arg7: memref<1x256xf32, #tpu.memory_space<vmem>>, %arg8: memref<1x256xf32, #tpu.memory_space<vmem>>) attributes {dimension_semantics = [#tpu.dimension_semantics<parallel>, #tpu.dimension_semantics<parallel>, #tpu.dimension_semantics<arbitrary>], iteration_bounds = array<i64: 2, 1, 1>, scalar_prefetch = 0 : i64, scratch_operands = 2 : i64, tpu.core_type = #tpu.core_type<tc>, window_params = [{transform_indices = @transform_0, window_bounds = array<i64: 1, 7, 256>}, {transform_indices = @transform_1, window_bounds = array<i64: 1, 1, 256>}, {transform_indices = @transform_2, window_bounds = array<i64: 1, 1, 8, 128>}, {transform_indices = @transform_3, window_bounds = array<i64: 1, 1, 8, 128>}]} {
    %c0_i32 = arith.constant 0 : i32
    %0 = arith.cmpi eq, %arg2, %c0_i32 : i32
    %1 = arith.extui %0 : i1 to i32
    %c0_i32_0 = arith.constant 0 : i32
    %2 = arith.cmpi ne, %1, %c0_i32_0 : i32
    scf.if %2 {
      %cst_20 = arith.constant 0.000000e+00 : f32
      %40 = vector.broadcast %cst_20 : f32 to vector<1x256xf32>
      %c0_21 = arith.constant 0 : index
      %c0_22 = arith.constant 0 : index
      %41 = vector.load %arg7[%c0_21, %c0_22] : memref<1x256xf32, #tpu.memory_space<vmem>>, vector<1x256xf32>
      tpu.vector_store %arg7[%c0_21, %c0_22], %40 {strides = array<i32>} : memref<1x256xf32, #tpu.memory_space<vmem>>, vector<1x256xf32>,
      %cst_23 = arith.constant 0.000000e+00 : f32
      %42 = vector.broadcast %cst_23 : f32 to vector<1x256xf32>
      %c0_24 = arith.constant 0 : index
      %c0_25 = arith.constant 0 : index
      %43 = vector.load %arg8[%c0_24, %c0_25] : memref<1x256xf32, #tpu.memory_space<vmem>>, vector<1x256xf32>
      tpu.vector_store %arg8[%c0_24, %c0_25], %42 {strides = array<i32>} : memref<1x256xf32, #tpu.memory_space<vmem>>, vector<1x256xf32>,
    } else {
    }
    %c0 = arith.constant 0 : index
    %c0_1 = arith.constant 0 : index
    %c0_2 = arith.constant 0 : index
    %3 = vector.load %arg3[%c0, %c0_1, %c0_2] : memref<1x7x256xf32, #tpu.memory_space<vmem>>, vector<1x7x256xf32>
    %4 = vector.shape_cast %3 : vector<1x7x256xf32> to vector<7x256xf32>
    %c0_3 = arith.constant 0 : index
    %c0_4 = arith.constant 0 : index
    %c0_5 = arith.constant 0 : index
    %5 = vector.load %arg4[%c0_3, %c0_4, %c0_5] : memref<1x1x256xi8, #tpu.memory_space<vmem>>, vector<1x1x256xi8>
    %6 = vector.shape_cast %5 : vector<1x1x256xi8> to vector<1x256xi8>
    %7 = arith.extsi %6 : vector<1x256xi8> to vector<1x256xi32>
    %cst = arith.constant dense<0xFF800000> : vector<256xf32>
    %8 = vector.multi_reduction <maximumf>, %4, %cst [0] : vector<7x256xf32> to vector<256xf32>
    %9 = vector.shape_cast %8 : vector<256xf32> to vector<1x256xf32>
    %10 = vector.broadcast %9 : vector<1x256xf32> to vector<7x256xf32>
    %11 = arith.subf %4, %10 : vector<7x256xf32>
    %12 = math.exp %11 : vector<7x256xf32>
    %cst_6 = arith.constant dense<0.000000e+00> : vector<256xf32>
    %13 = vector.multi_reduction <add>, %12, %cst_6 [0] : vector<7x256xf32> to vector<256xf32>
    %14 = vector.shape_cast %13 : vector<256xf32> to vector<1x256xf32>
    %15 = math.log %14 : vector<1x256xf32>
    %16 = arith.addf %9, %15 : vector<1x256xf32>
    %17 = tpu.iota {dimensions = array<i32: 0>} : vector<7x256xi32>
    %18 = vector.broadcast %7 : vector<1x256xi32> to vector<7x256xi32>
    %19 = arith.cmpi eq, %17, %18 : vector<7x256xi32>
    %cst_7 = arith.constant 0.000000e+00 : f32
    %20 = vector.broadcast %cst_7 : f32 to vector<7x256xf32>
    %21 = arith.select %19, %4, %20 : vector<7x256xi1>, vector<7x256xf32>
    %cst_8 = arith.constant dense<0.000000e+00> : vector<256xf32>
    %22 = vector.multi_reduction <add>, %21, %cst_8 [0] : vector<7x256xf32> to vector<256xf32>
    %23 = vector.shape_cast %22 : vector<256xf32> to vector<1x256xf32>
    %24 = arith.subf %16, %23 : vector<1x256xf32>
    %c6_i32 = arith.constant 6 : i32
    %25 = vector.broadcast %c6_i32 : i32 to vector<1x256xi32>
    %26 = arith.cmpi ne, %7, %25 : vector<1x256xi32>
    %c0_9 = arith.constant 0 : index
    %c0_10 = arith.constant 0 : index
    %27 = vector.load %arg7[%c0_9, %c0_10] : memref<1x256xf32, #tpu.memory_space<vmem>>, vector<1x256xf32>
    %cst_11 = arith.constant 0.000000e+00 : f32
    %28 = vector.broadcast %cst_11 : f32 to vector<1x256xf32>
    %29 = arith.select %26, %24, %28 : vector<1x256xi1>, vector<1x256xf32>
    %30 = arith.addf %27, %29 : vector<1x256xf32>
    %c0_12 = arith.constant 0 : index
    %c0_13 = arith.constant 0 : index
    %31 = vector.load %arg7[%c0_12, %c0_13] : memref<1x256xf32, #tpu.memory_space<vmem>>, vector<1x256xf32>
    tpu.vector_store %arg7[%c0_12, %c0_13], %30 {strides = array<i32>} : memref<1x256xf32, #tpu.memory_space<vmem>>, vector<1x256xf32>,
    %c0_14 = arith.constant 0 : index
    %c0_15 = arith.constant 0 : index
    %32 = vector.load %arg8[%c0_14, %c0_15] : memref<1x256xf32, #tpu.memory_space<vmem>>, vector<1x256xf32>
    %33 = arith.extui %26 : vector<1x256xi1> to vector<1x256xi32>
    %34 = arith.sitofp %33 : vector<1x256xi32> to vector<1x256xf32>
    %35 = arith.addf %32, %34 : vector<1x256xf32>
    %c0_16 = arith.constant 0 : index
    %c0_17 = arith.constant 0 : index
    %36 = vector.load %arg8[%c0_16, %c0_17] : memref<1x256xf32, #tpu.memory_space<vmem>>, vector<1x256xf32>
    tpu.vector_store %arg8[%c0_16, %c0_17], %35 {strides = array<i32>} : memref<1x256xf32, #tpu.memory_space<vmem>>, vector<1x256xf32>,
    %c0_i32_18 = arith.constant 0 : i32
    %37 = arith.cmpi eq, %arg2, %c0_i32_18 : i32
    %38 = arith.extui %37 : i1 to i32
    %c0_i32_19 = arith.constant 0 : i32
    %39 = arith.cmpi ne, %38, %c0_i32_19 : i32
    scf.if %39 {
      %c0_20 = arith.constant 0 : index
      %c0_21 = arith.constant 0 : index
      %40 = vector.load %arg7[%c0_20, %c0_21] : memref<1x256xf32, #tpu.memory_space<vmem>>, vector<1x256xf32>
      %41 = vector.shape_cast %40 : vector<1x256xf32> to vector<1x1x256xf32>
      %cst_22 = arith.constant dense<0.000000e+00> : vector<1xf32>
      %42 = vector.multi_reduction <add>, %41, %cst_22 [1, 2] : vector<1x1x256xf32> to vector<1xf32>
      %43 = vector.shape_cast %42 : vector<1xf32> to vector<1x1x1xf32>
      %44 = vector.extract %43[0, 0, 0] : f32 from vector<1x1x1xf32>
      %c0_23 = arith.constant 0 : index
      %c0_24 = arith.constant 0 : index
      %45 = vector.load %arg8[%c0_23, %c0_24] : memref<1x256xf32, #tpu.memory_space<vmem>>, vector<1x256xf32>
      %46 = vector.shape_cast %45 : vector<1x256xf32> to vector<1x1x256xf32>
      %cst_25 = arith.constant dense<0.000000e+00> : vector<1xf32>
      %47 = vector.multi_reduction <add>, %46, %cst_25 [1, 2] : vector<1x1x256xf32> to vector<1xf32>
      %48 = vector.shape_cast %47 : vector<1xf32> to vector<1x1x1xf32>
      %49 = vector.extract %48[0, 0, 0] : f32 from vector<1x1x1xf32>
      %50 = vector.broadcast %44 : f32 to vector<1x8x128xf32>
      %c0_26 = arith.constant 0 : index
      %c0_27 = arith.constant 0 : index
      %c0_28 = arith.constant 0 : index
      %c0_29 = arith.constant 0 : index
      %51 = vector.load %arg5[%c0_26, %c0_27, %c0_28, %c0_29] : memref<1x1x8x128xf32, #tpu.memory_space<vmem>>, vector<1x1x8x128xf32>
      %52 = vector.shape_cast %51 : vector<1x1x8x128xf32> to vector<1x8x128xf32>
      %53 = vector.shape_cast %50 : vector<1x8x128xf32> to vector<1x1x8x128xf32>
      tpu.vector_store %arg5[%c0_26, %c0_27, %c0_28, %c0_29], %53 {strides = array<i32>} : memref<1x1x8x128xf32, #tpu.memory_space<vmem>>, vector<1x1x8x128xf32>,
      %54 = vector.broadcast %49 : f32 to vector<1x8x128xf32>
      %c0_30 = arith.constant 0 : index
      %c0_31 = arith.constant 0 : index
      %c0_32 = arith.constant 0 : index
      %c0_33 = arith.constant 0 : index
      %55 = vector.load %arg6[%c0_30, %c0_31, %c0_32, %c0_33] : memref<1x1x8x128xf32, #tpu.memory_space<vmem>>, vector<1x1x8x128xf32>
      %56 = vector.shape_cast %55 : vector<1x1x8x128xf32> to vector<1x8x128xf32>
      %57 = vector.shape_cast %54 : vector<1x8x128xf32> to vector<1x1x8x128xf32>
      tpu.vector_store %arg6[%c0_30, %c0_31, %c0_32, %c0_33], %57 {strides = array<i32>} : memref<1x1x8x128xf32, #tpu.memory_space<vmem>>, vector<1x1x8x128xf32>,
    } else {
    }
    return
  }
  func.func @transform_0(%arg0: i32, %arg1: i32, %arg2: i32) -> (i32, i32, i32) {
    %c1_i32 = arith.constant 1 : i32
    %0 = arith.muli %arg1, %c1_i32 : i32
    %1 = arith.addi %0, %arg2 : i32
    %c0_i32 = arith.constant 0 : i32
    %c0_i32_0 = arith.constant 0 : i32
    return %arg0, %c0_i32, %1 : i32, i32, i32
  }
  func.func @transform_1(%arg0: i32, %arg1: i32, %arg2: i32) -> (i32, i32, i32) {
    %c1_i32 = arith.constant 1 : i32
    %0 = arith.muli %arg1, %c1_i32 : i32
    %1 = arith.addi %0, %arg2 : i32
    %c0_i32 = arith.constant 0 : i32
    %c0_i32_0 = arith.constant 0 : i32
    return %arg0, %c0_i32, %1 : i32, i32, i32
  }
  func.func @transform_2(%arg0: i32, %arg1: i32, %arg2: i32) -> (i32, i32, i32, i32) {
    %c0_i32 = arith.constant 0 : i32
    %c0_i32_0 = arith.constant 0 : i32
    %c0_i32_1 = arith.constant 0 : i32
    return %arg0, %arg1, %c0_i32, %c0_i32_0 : i32, i32, i32, i32
  }
  func.func @transform_3(%arg0: i32, %arg1: i32, %arg2: i32) -> (i32, i32, i32, i32) {
    %c0_i32 = arith.constant 0 : i32
    %c0_i32_0 = arith.constant 0 : i32
    %c0_i32_1 = arith.constant 0 : i32
    return %arg0, %arg1, %c0_i32, %c0_i32_0 : i32, i32, i32, i32
  }
}

</mosaic_0001>

<llo_original>
// kernel: tpu_custom_call.1
$region0: #{tpu_custom_call.1}
  #allocation0 [shape = 'u32[]', space=smem, size = 0x4, offset = 0x4, fixed_abs, tag = 'smem constant byte address 0x4 - core index']
  #allocation1 [shape = 'u32[72,128]{1,0:T(1,128)}', space=vmem, size = 0x9000, scoped, tag = 'internal scratch']
  #allocation2 [shape = 'f32[1,256]{1,0:T(1,128)}', space=vmem, size = 0x400, scoped, tag = 'scratch operand']
  #allocation3 [shape = 'f32[1,256]{1,0:T(1,128)}', space=vmem, size = 0x400, scoped, tag = 'scratch operand']
  %s0 = inlined_call_operand.vmem [shape: f32[2,7,256], index: 0, kind: input, shape index: {}]
  %s1 = inlined_call_operand.vmem [shape: s8[2,1,256], index: 1, kind: input, shape index: {}]
  %s2 = inlined_call_operand.hbm [shape: f32[2,1,8,128], index: 2, kind: output, shape index: {0}]
  %s3 = inlined_call_operand.hbm [shape: f32[2,1,8,128], index: 3, kind: output, shape index: {1}]
  %4 = xla_tuple %s2, %s3
  %s5 = sld [smem:[#allocation0]]
  $region57: #{tpu_custom_call.1} parent=0
    _
  %s7 = ssub.s32 1, %s5
  %s8 = scalar_select 0, %s7, %s5
  $region1: #{tpu_custom_call.1} parent=0
    #allocation4 [shape = 'u8[8192]{0}', space=vmem, size = 0x2000, scoped, tag = 'output window, operand 0']
    #allocation5 [shape = 's32[2]{0}', space=sflag, size = 0x8, scoped, tag = 'scoped memory for tpu_custom_call.1']
    #allocation6 [shape = 'u8[8192]{0}', space=vmem, size = 0x2000, scoped, tag = 'output window, operand 1']
    #allocation7 [shape = 's32[2]{0}', space=sflag, size = 0x8, scoped, tag = 'scoped memory for tpu_custom_call.1']
    %9 = vsyncpa [#allocation5], 0
    %s10 = scalar_lea.sflag [#allocation5], 1
    %11 = vsyncpa %s10, 0
    %12 = vsyncpa [#allocation7], 0
    %s13 = scalar_lea.sflag [#allocation7], 1
    %14 = vsyncpa %s13, 0
    loop: start=0, step=1, limit=4
    $region2: #{tpu_custom_call.1} parent=1 // loop_pre_header
      _
    $region3: #{tpu_custom_call.1} parent=1 // loop_header
      %s16 = sphi 0, %s20
      %p17 = scmp.ge.s32.totalorder %s16, 4
      %s23 = sphi 0, %s42
      %s24 = sphi 0, %s38
      %s25 = sphi 0, %s34
      %s26 = sphi 0, %s23
      %s27 = sphi 0, %s24
      %s28 = sphi 0, %s25
      %s29 = sphi 0, %s26
      %s30 = sphi 0, %s27
      %s31 = sphi 0, %s28
      %s49 = sphi 0, %s51
      %s52 = sphi 0, %s49
      %s53 = sphi 0, %s52
      %s69 = sphi 0, %s53
      %s79 = sphi 0, %s81
      %s82 = sphi 0, %s79
      %s83 = sphi 0, %s82
      %s99 = sphi 0, %s83
      %s107 = sphi 0, %s109
      %s110 = sphi 0, %s107
      %s111 = sphi 0, %s110
      %s127 = sphi 0, %s111
      %s135 = sphi 0, %s137
      %s138 = sphi 0, %s135
      %s139 = sphi 0, %s138
      %s155 = sphi 0, %s139
    $region4: #{tpu_custom_call.1} parent=1 // loop_header_branch
      %19 = sbr.rel (%p17) target = $region8
    $region5: #{tpu_custom_call.1} parent=1 // loop_body
      %s21 = ssub.s32 %s16, 1
      %s22 = ssub.s32 %s16, 2
      %s32 = sadd.s32 1, %s25
      %p33 = scmp.ge.s32.totalorder %s32, 1
      %s34 = scalar_select %p33, 0, %s32
      %s35 = sadd.s32 1, %s24
      %s36 = scalar_select %p33, %s35, %s24
      %p37 = scmp.ge.s32.totalorder %s36, 1
      %s38 = scalar_select %p37, 0, %s36
      %s39 = sadd.s32 1, %s23
      %s40 = scalar_select %p37, %s39, %s23
      %p41 = scmp.ge.s32.totalorder %s40, 2
      %s42 = scalar_select %p41, 0, %s40
      %s43 = sadd.s32 %s24, %s25
      %s44 = sadd.s32 %s38, %s34
      %s45 = ssub.s32 %s23, %s42
      %s46 = ssub.s32 %s43, %s44
      %s47 = sor.u32 %s45, %s46
      %p48 = scmp.eq.s32.totalorder %s47, 0
      %s50 = sadd.s32 %s49, 1
      %s51 = scalar_select %p48, %s49, %s50
      %p54 = pneg %p48
      %p55 = scmp.eq.s32.totalorder %s16, 1
      %p56 = por %p54, %p55
      %p57 = scmp.ne.s32.totalorder %s49, %s52
      %p58 = scmp.eq.s32.totalorder %s16, 0
      %p59 = por %p57, %p58
      %p60 = scmp.ne.s32.totalorder %s49, %s52
      %p61 = scmp.eq.s32.totalorder %s21, 1
      %p62 = por %p60, %p61
      %p63 = scmp.ne.s32.totalorder %s52, %s53
      %p64 = scmp.eq.s32.totalorder %s21, 0
      %p65 = por %p63, %p64
      %p66 = scmp.ne.s32.totalorder %s52, %s53
      %p67 = scmp.eq.s32.totalorder %s22, 1
      %p68 = por %p66, %p67
      %p70 = scmp.ne.s32.totalorder %s53, %s69
      %p71 = scmp.eq.s32.totalorder %s22, 0
      %p72 = por %p70, %p71
      %s73 = sadd.s32 %s24, %s25
      %s74 = sadd.s32 %s38, %s34
      %s75 = ssub.s32 %s23, %s42
      %s76 = ssub.s32 %s73, %s74
      %s77 = sor.u32 %s75, %s76
      %p78 = scmp.eq.s32.totalorder %s77, 0
      %s80 = sadd.s32 %s79, 1
      %s81 = scalar_select %p78, %s79, %s80
      %p84 = pneg %p78
      %p85 = scmp.eq.s32.totalorder %s16, 1
      %p86 = por %p84, %p85
      %p87 = scmp.ne.s32.totalorder %s79, %s82
      %p88 = scmp.eq.s32.totalorder %s16, 0
      %p89 = por %p87, %p88
      %p90 = scmp.ne.s32.totalorder %s79, %s82
      %p91 = scmp.eq.s32.totalorder %s21, 1
      %p92 = por %p90, %p91
      %p93 = scmp.ne.s32.totalorder %s82, %s83
      %p94 = scmp.eq.s32.totalorder %s21, 0
      %p95 = por %p93, %p94
      %p96 = scmp.ne.s32.totalorder %s82, %s83
      %p97 = scmp.eq.s32.totalorder %s22, 1
      %p98 = por %p96, %p97
      %p100 = scmp.ne.s32.totalorder %s83, %s99
      %p101 = scmp.eq.s32.totalorder %s22, 0
      %p102 = por %p100, %p101
      %s103 = ssub.s32 %s23, %s42
      %s104 = ssub.s32 %s24, %s38
      %s105 = sor.u32 %s103, %s104
      %p106 = scmp.eq.s32.totalorder %s105, 0
      %s108 = sadd.s32 %s107, 1
      %s109 = scalar_select %p106, %s107, %s108
      %p112 = pneg %p106
      %p113 = scmp.eq.s32.totalorder %s16, 1
      %p114 = por %p112, %p113
      %p115 = scmp.ne.s32.totalorder %s107, %s110
      %p116 = scmp.eq.s32.totalorder %s16, 0
      %p117 = por %p115, %p116
      %p118 = scmp.ne.s32.totalorder %s107, %s110
      %p119 = scmp.eq.s32.totalorder %s21, 1
      %p120 = por %p118, %p119
      %p121 = scmp.ne.s32.totalorder %s110, %s111
      %p122 = scmp.eq.s32.totalorder %s21, 0
      %p123 = por %p121, %p122
      %p124 = scmp.ne.s32.totalorder %s110, %s111
      %p125 = scmp.eq.s32.totalorder %s22, 1
      %p126 = por %p124, %p125
      %p128 = scmp.ne.s32.totalorder %s111, %s127
      %p129 = scmp.eq.s32.totalorder %s22, 0
      %p130 = por %p128, %p129
      %s131 = ssub.s32 %s23, %s42
      %s132 = ssub.s32 %s24, %s38
      %s133 = sor.u32 %s131, %s132
      %p134 = scmp.eq.s32.totalorder %s133, 0
      %s136 = sadd.s32 %s135, 1
      %s137 = scalar_select %p134, %s135, %s136
      %p140 = pneg %p134
      %p141 = scmp.eq.s32.totalorder %s16, 1
      %p142 = por %p140, %p141
      %p143 = scmp.ne.s32.totalorder %s135, %s138
      %p144 = scmp.eq.s32.totalorder %s16, 0
      %p145 = por %p143, %p144
      %p146 = scmp.ne.s32.totalorder %s135, %s138
      %p147 = scmp.eq.s32.totalorder %s21, 1
      %p148 = por %p146, %p147
      %p149 = scmp.ne.s32.totalorder %s138, %s139
      %p150 = scmp.eq.s32.totalorder %s21, 0
      %p151 = por %p149, %p150
      %p152 = scmp.ne.s32.totalorder %s138, %s139
      %p153 = scmp.eq.s32.totalorder %s22, 1
      %p154 = por %p152, %p153
      %p156 = scmp.ne.s32.totalorder %s139, %s155
      %p157 = scmp.eq.s32.totalorder %s22, 0
      %p158 = por %p156, %p157
      %p159 = scmp.le.s32.totalorder 1, %s16
      %p160 = scmp.lt.s32.totalorder %s16, 3
      %p161 = pnand %p159, %p160
      %p162 = pneg %p161
      // Predicated region
      $region9: #{tpu_custom_call.1} parent=5 // pred_check
        _
      $region10: #{tpu_custom_call.1} parent=5 // pred_check_branch
        %164 = sbr.rel (%p161) target = $region12
      $region11: #{tpu_custom_call.1} parent=5 // pred_region
        %s165 = ssub.s32 %s16, 1
      $region12: #{tpu_custom_call.1} parent=5 // pred_fallthru
        _
      %p166 = scmp.lt.s32.totalorder %s16, 2
      // Predicated region
      $region13: #{tpu_custom_call.1} parent=5 // pred_check
        %p167 = pneg %p166
      $region14: #{tpu_custom_call.1} parent=5 // pred_check_branch
        %169 = sbr.rel (%p167) target = $region16
      $region15: #{tpu_custom_call.1} parent=5 // pred_region
        // Predicated region
        $region17: #{tpu_custom_call.1} parent=15 // pred_check
          %p170 = pneg %p59
        $region18: #{tpu_custom_call.1} parent=15 // pred_check_branch
          %172 = sbr.rel (%p170) target = $region20
        $region19: #{tpu_custom_call.1} parent=15 // pred_region
          %s173 = sadd.s32 %s24, %s25
          %s174 = smul.u32 2, %s173
          %p175 = scmp.lt.s32.totalorder %s23, 1
          %s176 = scalar_select %p175, %s23, 1
          %p177 = scmp.lt.s32.totalorder %s174, 1
          %s178 = scalar_select %p177, %s174, 1
          %s179 = smul.addr %s176, 2
          %s180 = sadd.s32 %s178, %s179
          %s181 = smul.addr %s180, 8
          %s182 = scalar_lea.vmem %s0, %s181
          %s183 = sadd.s32 %s24, %s25
          %s184 = smul.u32 2, %s183
        $region20: #{tpu_custom_call.1} parent=15 // pred_fallthru
          _
        // Predicated region
        $region21: #{tpu_custom_call.1} parent=15 // pred_check
          %p185 = pneg %p89
        $region22: #{tpu_custom_call.1} parent=15 // pred_check_branch
          %187 = sbr.rel (%p185) target = $region24
        $region23: #{tpu_custom_call.1} parent=15 // pred_region
          %s188 = sadd.s32 %s24, %s25
          %s189 = smul.u32 2, %s188
          %p190 = scmp.lt.s32.totalorder %s23, 1
          %s191 = scalar_select %p190, %s23, 1
          %p192 = scmp.lt.s32.totalorder %s189, 1
          %s193 = scalar_select %p192, %s189, 1
          %s194 = smul.addr %s191, 2
          %s195 = sadd.s32 %s193, %s194
          %s196 = scalar_lea.vmem %s1, %s195
          %s197 = sadd.s32 %s24, %s25
          %s198 = smul.u32 2, %s197
        $region24: #{tpu_custom_call.1} parent=15 // pred_fallthru
          _
      $region16: #{tpu_custom_call.1} parent=5 // pred_fallthru
        _
      %p199 = scmp.le.s32.totalorder 1, %s16
      %p200 = scmp.lt.s32.totalorder %s16, 3
      %p201 = pnand %p199, %p200
      %p202 = pneg %p201
      // Predicated region
      $region25: #{tpu_custom_call.1} parent=5 // pred_check
        _
      $region26: #{tpu_custom_call.1} parent=5 // pred_check_branch
        %204 = sbr.rel (%p201) target = $region28
      $region27: #{tpu_custom_call.1} parent=5 // pred_region
        %s205 = ssub.s32 %s16, 1
        %s206 = sadd.s32 %s27, %s28
        %s207 = smul.u32 2, %s206
        %p208 = scmp.lt.s32.totalorder %s26, 1
        %s209 = scalar_select %p208, %s26, 1
        %p210 = scmp.lt.s32.totalorder %s207, 1
        %s211 = scalar_select %p210, %s207, 1
        %s212 = smul.addr %s209, 2
        %s213 = sadd.s32 %s211, %s212
        %s214 = smul.addr %s213, 8
        %s215 = scalar_lea.vmem %s0, %s214
        %p216 = pneg %p65
        %p217 = pneg %p62
        %s218 = sadd.s32 %s27, %s28
        %s219 = smul.u32 2, %s218
        %p220 = scmp.lt.s32.totalorder %s26, 1
        %s221 = scalar_select %p220, %s26, 1
        %p222 = scmp.lt.s32.totalorder %s219, 1
        %s223 = scalar_select %p222, %s219, 1
        %s224 = smul.addr %s221, 2
        %s225 = sadd.s32 %s223, %s224
        %s226 = scalar_lea.vmem %s1, %s225
        %p227 = pneg %p95
        %p228 = pneg %p92
        %p229 = pneg %p123
        %p230 = pneg %p120
        %s231 = sand.u32 %s110, 1
        %s232 = scalar_lea.sflag [#allocation5], %s231
        %s233 = sand.u32 %s110, 1
        %s234 = smul.addr %s233, 8
        %s235 = scalar_lea.vmem [#allocation4], %s234
        %p236 = pneg %p151
        %p237 = pneg %p148
        %s238 = sand.u32 %s138, 1
        %s239 = scalar_lea.sflag [#allocation7], %s238
        %s240 = sand.u32 %s138, 1
        %s241 = smul.addr %s240, 8
        %s242 = scalar_lea.vmem [#allocation6], %s241
        %s243 = sadd.s32 %s27, %s28
        %s244 = smul.u32 2, %s243
        %p245 = scmp.lt.s32.totalorder %s26, 1
        %s246 = scalar_select %p245, %s26, 1
        %p247 = scmp.lt.s32.totalorder %s244, 1
        %s248 = scalar_select %p247, %s244, 1
        %s249 = smul.addr %s246, 2
        %s250 = sadd.s32 %s248, %s249
        %s251 = smul.addr %s250, 8
        %s252 = scalar_lea.vmem %s0, %s251
        %s253 = sadd.s32 %s27, %s28
        %s254 = smul.u32 2, %s253
        %s255 = sadd.s32 %s27, %s28
        %s256 = smul.u32 2, %s255
        %p257 = scmp.lt.s32.totalorder %s26, 1
        %s258 = scalar_select %p257, %s26, 1
        %p259 = scmp.lt.s32.totalorder %s256, 1
        %s260 = scalar_select %p259, %s256, 1
        %s261 = smul.addr %s258, 2
        %s262 = sadd.s32 %s260, %s261
        %s263 = scalar_lea.vmem %s1, %s262
        %s264 = sadd.s32 %s27, %s28
        %s265 = smul.u32 2, %s264
        %p266 = scmp.eq.s32.totalorder %s28, 0
        // Predicated region
        $region29: #{tpu_custom_call.1} parent=27 // pred_check
          %p267 = pneg %p266
        $region30: #{tpu_custom_call.1} parent=27 // pred_check_branch
          %269 = sbr.rel (%p267) target = $region32
        $region31: #{tpu_custom_call.1} parent=27 // pred_region
          %v270 = vlaneseq
          %vm271 = vcmp.ge.s32.totalorder %v270, 0
          %vm272 = vcmp.lt.s32.totalorder %v270, 256
          %vm273 = vmand %vm271, %vm272
          %274 = vst.msk [vmem:[#allocation2] sm:$0x3] %vm273, 0.0
          %275 = vst.msk [vmem:[#allocation3] sm:$0x3] %vm273, 0.0
        $region32: #{tpu_custom_call.1} parent=27 // pred_fallthru
          _
        %v276 = vld [vmem:[%s252] sm:$0x7f]
        %v277 = vld [vmem:[%s252 + $0x8] sm:$0x7f]
        %v278 = vld [vmem:[%s263] sm:$0x3]
        %v279 = vunpack.c.0.s8 %v278
        %vm280 = vcmask 1046528
        %v281 = vsel %vm280, %v276, -inf
        %v282 = vrot.slane %v281, 4
        %v283 = vmax.f32 %v281, %v282
        %v284 = vrot.slane %v283, 2
        %v285 = vmax.f32 %v283, %v284
        %v286 = vrot.slane %v285, 1
        %v287 = vmax.f32 %v285, %v286
        %v288 = vsel %vm280, %v277, -inf
        %v289 = vrot.slane %v288, 4
        %v290 = vmax.f32 %v288, %v289
        %v291 = vrot.slane %v290, 2
        %v292 = vmax.f32 %v290, %v291
        %v293 = vrot.slane %v292, 1
        %v294 = vmax.f32 %v292, %v293
        %v295 = vsub.f32 %v276, %v287
        %v296 = vsub.f32 %v277, %v294
        %v297 = vmul.f32 %v295, 1.442695
        %v298 = vpow.pop %v297
        %v299 = vmul.f32 %v296, 1.442695
        %v300 = vpow.pop %v299
        %v301 = vsel %vm280, %v298, 0.0
        %v302 = vrot.slane %v301, 4
        %v303 = vadd.f32 %v301, %v302
        %v304 = vrot.slane %v303, 2
        %v305 = vadd.f32 %v303, %v304
        %v306 = vrot.slane %v305, 1
        %v307 = vadd.f32 %v305, %v306
        %v308 = vsel %vm280, %v300, 0.0
        %v309 = vrot.slane %v308, 4
        %v310 = vadd.f32 %v308, %v309
        %v311 = vrot.slane %v310, 2
        %v312 = vadd.f32 %v310, %v311
        %v313 = vrot.slane %v312, 1
        %v314 = vadd.f32 %v312, %v313
        %v315 = vlog2.pop %v307
        %v316 = vmul.f32 %v315, 0.6931472
        %v317 = vlog2.pop %v314
        %v318 = vmul.f32 %v317, 0.6931472
        %v319 = vadd.f32 %v287, %v316
        %v320 = vadd.f32 %v294, %v318
        %v321 = vlaneseq
        %v322 = vshrl.u32 %v321, 7
        %v323 = vperm.slane %v279, 0
        %v324 = vperm.slane %v279, 4
        %v325 = vperm.slane %v323, 0
        %v326 = vperm.slane %v324, 0
        %vm327 = vcmp.eq.s32.totalorder %v322, %v325
        %vm328 = vcmp.eq.s32.totalorder %v322, %v326
        %v329 = vsel %vm327, %v276, 0.0
        %v330 = vsel %vm328, %v277, 0.0
        %v331 = vsel %vm280, %v329, 0.0
        %v332 = vrot.slane %v331, 4
        %v333 = vadd.f32 %v331, %v332
        %v334 = vrot.slane %v333, 2
        %v335 = vadd.f32 %v333, %v334
        %v336 = vrot.slane %v335, 1
        %v337 = vadd.f32 %v335, %v336
        %v338 = vsel %vm280, %v330, 0.0
        %v339 = vrot.slane %v338, 4
        %v340 = vadd.f32 %v338, %v339
        %v341 = vrot.slane %v340, 2
        %v342 = vadd.f32 %v340, %v341
        %v343 = vrot.slane %v342, 1
        %v344 = vadd.f32 %v342, %v343
        %v345 = vsub.f32 %v319, %v337
        %v346 = vsub.f32 %v320, %v344
        %vm347 = vcmp.ne.s32.totalorder %v279, 6
        %v348 = vld [vmem:[#allocation2] sm:$0x3]
        %v351 = vrot.slane %v346, 4
        %vm352 = vcmask 1043456
        %v353 = vsel %vm352, %v345, %v351
        %v355 = vsel %vm347, %v353, 0.0
        %v357 = vrot.slane %v355, 3
        %vm358 = vcmask 1040384
        %v359 = vsel %vm358, %v355, %v357
        %v361 = vadd.f32 %v348, %v359
        %v362 = vlaneseq
        %vm363 = vcmp.ge.s32.totalorder %v362, 0
        %vm364 = vcmp.lt.s32.totalorder %v362, 256
        %vm365 = vmand %vm363, %vm364
        %366 = vst.msk [vmem:[#allocation2] sm:$0x3] %vm365, %v361
        %v367 = vld [vmem:[#allocation3] sm:$0x3]
        %v368 = vsel %vm347, 1, 0
        %v369 = vcvt.s32.f32 %v368
        %v371 = vrot.slane %v369, 3
        %v372 = vsel %vm358, %v369, %v371
        %v374 = vadd.f32 %v367, %v372
        %375 = vst.msk [vmem:[#allocation3] sm:$0x3] %vm365, %v374
        // Predicated region
        $region33: #{tpu_custom_call.1} parent=27 // pred_check
          %p376 = pneg %p266
        $region34: #{tpu_custom_call.1} parent=27 // pred_check_branch
          %378 = sbr.rel (%p376) target = $region36
        $region35: #{tpu_custom_call.1} parent=27 // pred_region
          %v379 = vld [vmem:[#allocation2] sm:$0x3]
          %v381 = vperm.slane %v379, 0
          %v382 = vperm.slane %v379, 1
          %v385 = vsel %vm358, %v381, 0.0
          %v386 = vsel %vm358, %v382, 0.0
          %v387 = vadd.f32 %v385, %v386
          %388 = vadd.xlane.f32.xlu0 %v387
          %v389 = vpop.xlane.xlu0 %388
          %v390 = vrot.slane %v389, 4
          %v391 = vadd.f32 %v389, %v390
          %v392 = vrot.slane %v391, 2
          %v393 = vadd.f32 %v391, %v392
          %v394 = vrot.slane %v393, 1
          %v395 = vadd.f32 %v393, %v394
          %s396 = vtos %v395
          %v397 = vld [vmem:[#allocation3] sm:$0x3]
          %v399 = vperm.slane %v397, 0
          %v400 = vperm.slane %v397, 1
          %v403 = vsel %vm358, %v399, 0.0
          %v404 = vsel %vm358, %v400, 0.0
          %v405 = vadd.f32 %v403, %v404
          %406 = vadd.xlane.f32.xlu0 %v405
          %v407 = vpop.xlane.xlu0 %406
          %v408 = vrot.slane %v407, 4
          %v409 = vadd.f32 %v407, %v408
          %v410 = vrot.slane %v409, 2
          %v411 = vadd.f32 %v409, %v410
          %v412 = vrot.slane %v411, 1
          %v413 = vadd.f32 %v411, %v412
          %s414 = vtos %v413
          %v415 = vstv %s396
          %416 = vst [vmem:[%s235] sm:$0xff] %v415
          %v417 = vstv %s414
          %418 = vst [vmem:[%s242] sm:$0xff] %v417
        $region36: #{tpu_custom_call.1} parent=27 // pred_fallthru
          _
        %s419 = sand.u32 %s110, 1
        %s420 = scalar_lea.sflag [#allocation5], %s419
        %s421 = sand.u32 %s110, 1
        %s422 = smul.addr %s421, 8
        %s423 = scalar_lea.vmem [#allocation4], %s422
        %s424 = sand.u32 %s138, 1
        %s425 = scalar_lea.sflag [#allocation7], %s424
        %s426 = sand.u32 %s138, 1
        %s427 = smul.addr %s426, 8
        %s428 = scalar_lea.vmem [#allocation6], %s427
        // Predicated region
        $region37: #{tpu_custom_call.1} parent=27 // pred_check
          %p429 = pneg %p120
        $region38: #{tpu_custom_call.1} parent=27 // pred_check_branch
          %431 = sbr.rel (%p429) target = $region40
        $region39: #{tpu_custom_call.1} parent=27 // pred_region
          %433 = vsyncadd %s420, 0
          %s434 = sadd.s32 %s27, %s26
          %s435 = smul.addr %s434, 8
          %s436 = scalar_lea.hbm %s2, %s435
          %s438 = sshll.u32 %s423, 4
          %s439 = int_to_ptr.vmem [resolvable:$true] %s438
          %s440 = sshll.u32 %s436, 4
          %s441 = int_to_ptr.hbm [resolvable:$true] %s440
          %443 = dma.vmem_to_hbm [thread:$0]  %s439, 128, %s441, %s420
        $region40: #{tpu_custom_call.1} parent=27 // pred_fallthru
          _
        // Predicated region
        $region41: #{tpu_custom_call.1} parent=27 // pred_check
          %p444 = pneg %p148
        $region42: #{tpu_custom_call.1} parent=27 // pred_check_branch
          %446 = sbr.rel (%p444) target = $region44
        $region43: #{tpu_custom_call.1} parent=27 // pred_region
          %448 = vsyncadd %s425, 0
          %s449 = sadd.s32 %s27, %s26
          %s450 = smul.addr %s449, 8
          %s451 = scalar_lea.hbm %s3, %s450
          %s453 = sshll.u32 %s428, 4
          %s454 = int_to_ptr.vmem [resolvable:$true] %s453
          %s455 = sshll.u32 %s451, 4
          %s456 = int_to_ptr.hbm [resolvable:$true] %s455
          %458 = dma.vmem_to_hbm [thread:$0]  %s454, 128, %s456, %s425
        $region44: #{tpu_custom_call.1} parent=27 // pred_fallthru
          _
      $region28: #{tpu_custom_call.1} parent=5 // pred_fallthru
        _
      %p459 = scmp.le.s32.totalorder 2, %s16
      // Predicated region
      $region45: #{tpu_custom_call.1} parent=5 // pred_check
        %p460 = pneg %p459
      $region46: #{tpu_custom_call.1} parent=5 // pred_check_branch
        %462 = sbr.rel (%p460) target = $region48
      $region47: #{tpu_custom_call.1} parent=5 // pred_region
        %s463 = ssub.s32 %s16, 2
        // Predicated region
        $region49: #{tpu_custom_call.1} parent=47 // pred_check
          %p464 = pneg %p126
        $region50: #{tpu_custom_call.1} parent=47 // pred_check_branch
          %466 = sbr.rel (%p464) target = $region52
        $region51: #{tpu_custom_call.1} parent=47 // pred_region
          %s467 = sand.u32 %s111, 1
          %s468 = scalar_lea.sflag [#allocation5], %s467
          %s469 = sand.u32 %s111, 1
          %s470 = smul.addr %s469, 8
          %s471 = scalar_lea.vmem [#allocation4], %s470
          %473 = dma.done %s468, 128
        $region52: #{tpu_custom_call.1} parent=47 // pred_fallthru
          _
        // Predicated region
        $region53: #{tpu_custom_call.1} parent=47 // pred_check
          %p474 = pneg %p154
        $region54: #{tpu_custom_call.1} parent=47 // pred_check_branch
          %476 = sbr.rel (%p474) target = $region56
        $region55: #{tpu_custom_call.1} parent=47 // pred_region
          %s477 = sand.u32 %s139, 1
          %s478 = scalar_lea.sflag [#allocation7], %s477
          %s479 = sand.u32 %s139, 1
          %s480 = smul.addr %s479, 8
          %s481 = scalar_lea.vmem [#allocation6], %s480
          %483 = dma.done %s478, 128
        $region56: #{tpu_custom_call.1} parent=47 // pred_fallthru
          _
      $region48: #{tpu_custom_call.1} parent=5 // pred_fallthru
        _
    $region6: #{tpu_custom_call.1} parent=1 // loop_footer
      %s20 = sadd.s32 1, %s16
    $region7: #{tpu_custom_call.1} parent=1 // loop_footer_branch
      %15 = sbr.rel target = $region3
    $region8: #{tpu_custom_call.1} parent=1 // loop_exit
      _
    %484 = vsyncpa [#allocation5], 1
    %s485 = scalar_lea.sflag [#allocation5], 1
    %486 = vsyncpa %s485, 1
    %487 = vsyncpa [#allocation7], 1
    %s488 = scalar_lea.sflag [#allocation7], 1
    %489 = vsyncpa %s488, 1

</llo_original>
